<compile_context>
chip_gen: v5e
topology: v5e:2x2
jax: 0.10.0
libtpu: 0.0.40
codegen_flags: <defaults>
</compile_context>

<pallas_src>
import math
from functools import partial

import numpy as np
import jax
import jax.numpy as jnp
from jax.experimental import pallas as pl
from jax.experimental.pallas import tpu as pltpu

# ---- static configuration (module hyper-parameters) -------------------------
BATCH = 8
COND_SIZE = 32        # condition_size  (n_observation feature dim)  = C
INPUT_SIZE = 24       # input_size      (n_target feature dim)       = T
OUTPUT_SIZE = 16      # output_size     (latent dim)                 = O
HIDDEN_SIZE = 32      # encoder_hidden_layer_size                    = H
HIDDEN_LAYER_NUM = 2  # encoder_hidden_layer_num -> 3 fc layers per encoder
FIX_VAR = 0.3         # fix_var

C, T, H, O = COND_SIZE, INPUT_SIZE, HIDDEN_SIZE, OUTPUT_SIZE
W_OUT = 128                 # packed output width (lane-dense; first 3*O lanes used)
N_HOIST = W_OUT + 6 * H     # 320: [out(128) | L0 p|q (64) | L1 p|q (64) | L2 p|q (64)]


# ---- Pallas kernel -----------------------------------------------------------
def _slpe_kernel(x_ref, noise_ref, w_all_ref, b_all_ref, w_res_ref, out_ref, *, std):
    f32 = jnp.float32
    relu = lambda v: jnp.maximum(v, 0.0)

    # Single hoisted dot: every x-dependent contribution + all biases.
    #   hc columns: [out(0:128) | L0 p,q (128:192) | L1 p,q (192:256) | L2 p,q (256:320)]
    hc = jnp.dot(x_ref[...], w_all_ref[...], preferred_element_type=f32) + b_all_ref[...]
    wr = w_res_ref[...]     # (2H, 4H + W_OUT): [L1 blkdiag | L2 blkdiag | out cols]

    # Merged residual chain, state r = [r_prior | r_post]  (B, 2H)
    r = relu(hc[:, W_OUT:W_OUT + 2 * H])
    r = relu(hc[:, W_OUT + 2 * H:W_OUT + 4 * H]
             + jnp.dot(r, wr[:, 0:2 * H], preferred_element_type=f32))
    r = relu(hc[:, W_OUT + 4 * H:W_OUT + 6 * H]
             + jnp.dot(r, wr[:, 2 * H:4 * H], preferred_element_type=f32))

    # Baked-output final dot: columns already mapped to [z | mu_sum | mu_prior | pad].
    out_ref[...] = (hc[:, 0:W_OUT]
                    + jnp.dot(r, wr[:, 4 * H:4 * H + W_OUT], preferred_element_type=f32)
                    + noise_ref[...] * std)


# ---- wrapper -----------------------------------------------------------------
@jax.jit
def slpe_forward(obs, tgt, noise, packed_params):
    B = obs.shape[0]
    x_cat = jnp.concatenate([obs, tgt], axis=-1)                          # (B, C+T)
    noise_pad = jnp.concatenate(
        [noise, jnp.zeros((B, W_OUT - noise.shape[1]), noise.dtype)], axis=-1)  # (B, 128)

    vmem = pl.BlockSpec(memory_space=pltpu.MemorySpace.VMEM)
    kernel = partial(_slpe_kernel, std=FIX_VAR)
    out = pl.pallas_call(
        kernel,
        out_shape=jax.ShapeDtypeStruct((B, W_OUT), jnp.float32),
        in_specs=[vmem] * (2 + len(packed_params)),
        out_specs=vmem,
    )(x_cat, noise_pad, *packed_params)

    z = out[:, 0:O]
    mu_sum = out[:, O:2 * O]
    mu_prior = out[:, 2 * O:3 * O]
    return z, mu_sum, mu_prior


# ---- parameter packing (done once, offline) -----------------------------------
def pack_params(params):
    (pw0, pb0, pw1, pb1, pw2, pb2, pwmu, pbmu,
     qw0, qb0, qw1, qb1, qw2, qb2, qwmu, qbmu) = params
    f32 = jnp.float32
    zC_H = jnp.zeros((C, H), f32)
    zT_H = jnp.zeros((T, H), f32)
    zT_O = jnp.zeros((T, O), f32)
    zH_H = jnp.zeros((H, H), f32)
    zH_O = jnp.zeros((H, O), f32)
    pad = W_OUT - 3 * O

    # hoisted weight slab: rows = [obs (C) | tgt (T)],
    # cols = [out(z|mu_sum|mu_prior|pad) | L0 p,q | L1 p,q | L2 p,q]
    obs_out = jnp.concatenate([pwmu[:C], pwmu[:C], pwmu[:C], jnp.zeros((C, pad), f32)], axis=1)
    obs_rows = jnp.concatenate(
        [obs_out, pw0, qw0[T:], pw1[:C], zC_H, pw2[:C], zC_H], axis=1)          # (C, 320)
    tgt_out = jnp.concatenate([qwmu[:T], qwmu[:T], zT_O, jnp.zeros((T, pad), f32)], axis=1)
    tgt_rows = jnp.concatenate(
        [tgt_out, zT_H, qw0[:T], zT_H, qw1[:T], zT_H, qw2[:T]], axis=1)         # (T, 320)
    w_all = jnp.concatenate([obs_rows, tgt_rows], axis=0)                       # (C+T, 320)

    # bias slab, same column layout
    b_out = jnp.concatenate([pbmu + qbmu, pbmu + qbmu, pbmu, jnp.zeros((1, pad), f32)], axis=1)
    b_all = jnp.concatenate([b_out, pb0, qb0, pb1, qb1, pb2, qb2], axis=1)      # (1, 320)

    # residual slab: rows = [r_prior (H) | r_post (H)],
    # cols = [L1 block-diag (2H) | L2 block-diag (2H) | out (W_OUT)]
    l1 = jnp.block([[pw1[C:], zH_H], [zH_H, qw1[T:]]])                          # (2H, 2H)
    l2 = jnp.block([[pw2[C:], zH_H], [zH_H, qw2[T:]]])                          # (2H, 2H)
    res_out_top = jnp.concatenate([pwmu[C:], pwmu[C:], pwmu[C:], jnp.zeros((H, pad), f32)], axis=1)
    res_out_bot = jnp.concatenate([qwmu[T:], qwmu[T:], zH_O, jnp.zeros((H, pad), f32)], axis=1)
    res_out = jnp.concatenate([res_out_top, res_out_bot], axis=0)               # (2H, 128)
    w_res = jnp.concatenate([l1, l2, res_out], axis=1)                          # (2H, 256)

    return (w_all, b_all, w_res)


# ---- deterministic parameter init (xavier_uniform weights, zero biases) ------
def _xavier(key, fan_in, fan_out):
    a = math.sqrt(6.0 / (fan_in + fan_out))
    return jax.random.uniform(key, (fan_in, fan_out), jnp.float32, -a, a)


def init_params(key):
    # (in_dim, out_dim) per linear; prior: input_size=C, condition_size=0
    prior_dims = [(C, H), (C + H, H), (C + H, H), (C + H, O)]
    # post: input_size=T, condition_size=C
    post_dims = [(T + C, H), (T + H, H), (T + H, H), (T + H, O)]
    keys = jax.random.split(key, len(prior_dims) + len(post_dims))
    params = []
    for i, (din, dout) in enumerate(prior_dims + post_dims):
        params.append(_xavier(keys[i], din, dout))
        params.append(jnp.zeros((1, dout), jnp.float32))
    return params


# ---- pure-JAX reference (mirrors the PyTorch forward) -------------------------
def _reference(obs, tgt, noise, params):
    (pw0, pb0, pw1, pb1, pw2, pb2, pwmu, pbmu,
     qw0, qb0, qw1, qb1, qw2, qb2, qwmu, qbmu) = params
    act = lambda v: jnp.maximum(v, 0.0)

    # prior (x=obs, c=None)
    res = act(obs @ pw0 + pb0)
    res = act(jnp.concatenate([obs, res], -1) @ pw1 + pb1)
    res = act(jnp.concatenate([obs, res], -1) @ pw2 + pb2)
    mu_prior = jnp.concatenate([obs, res], -1) @ pwmu + pbmu

    # post (x=tgt, c=obs)
    res = act(jnp.concatenate([tgt, obs], -1) @ qw0 + qb0)
    res = act(jnp.concatenate([tgt, res], -1) @ qw1 + qb1)
    res = act(jnp.concatenate([tgt, res], -1) @ qw2 + qb2)
    mu_post = jnp.concatenate([tgt, res], -1) @ qwmu + qbmu

    latent_code = mu_post + noise * FIX_VAR
    return latent_code + mu_prior, mu_prior + mu_post, mu_prior


# ---- main ---------------------------------------------------------------------
if __name__ == "__main__":
    key = jax.random.PRNGKey(0)
    k_obs, k_tgt, k_noise, k_par = jax.random.split(key, 4)

    n_observation = jax.random.normal(k_obs, (BATCH, COND_SIZE), jnp.float32)
    n_target = jax.random.normal(k_tgt, (BATCH, INPUT_SIZE), jnp.float32)
    # reparameterization noise (torch.randn_like) generated deterministically here
    noise = jax.random.normal(k_noise, (BATCH, OUTPUT_SIZE), jnp.float32)

    params = init_params(k_par)
    packed = pack_params(params)

    z, mu_sum, mu_prior = slpe_forward(n_observation, n_target, noise, packed)
    jax.block_until_ready(z)

    z_r, mu_sum_r, mu_prior_r = _reference(n_observation, n_target, noise, params)
    np.testing.assert_allclose(np.asarray(z), np.asarray(z_r), rtol=1e-5, atol=1e-5)
    np.testing.assert_allclose(np.asarray(mu_sum), np.asarray(mu_sum_r), rtol=1e-5, atol=1e-5)
    np.testing.assert_allclose(np.asarray(mu_prior), np.asarray(mu_prior_r), rtol=1e-5, atol=1e-5)

    print("KERNEL_OK")
</pallas_src>

<mosaic_0001>
module attributes {stable_mosaic.version = 11 : i64} {
  func.func @_slpe_kernel(%arg0: memref<8x56xf32, #tpu.memory_space<vmem>>, %arg1: memref<8x128xf32, #tpu.memory_space<vmem>>, %arg2: memref<56x320xf32, #tpu.memory_space<vmem>>, %arg3: memref<1x320xf32, #tpu.memory_space<vmem>>, %arg4: memref<64x256xf32, #tpu.memory_space<vmem>>, %arg5: memref<8x128xf32, #tpu.memory_space<vmem>>) attributes {dimension_semantics = [], scalar_prefetch = 0 : i64, scratch_operands = 0 : i64, tpu.core_type = #tpu.core_type<tc>} {
    %c0 = arith.constant 0 : index
    %c0_0 = arith.constant 0 : index
    %0 = vector.load %arg0[%c0, %c0_0] : memref<8x56xf32, #tpu.memory_space<vmem>>, vector<8x56xf32>
    %c0_1 = arith.constant 0 : index
    %c0_2 = arith.constant 0 : index
    %1 = vector.load %arg2[%c0_1, %c0_2] : memref<56x320xf32, #tpu.memory_space<vmem>>, vector<56x320xf32>
    %cst = arith.constant dense<0.000000e+00> : vector<8x320xf32>
    %2 = tpu.matmul %0, %1, %cst {dimension_numbers = #tpu.dot_dimension_numbers<[1], [0], [0], [1], [0, 0, 1, 1], [], []>} : vector<8x56xf32>, vector<56x320xf32>, vector<8x320xf32> -> vector<8x320xf32>
    %c0_3 = arith.constant 0 : index
    %c0_4 = arith.constant 0 : index
    %3 = vector.load %arg3[%c0_3, %c0_4] : memref<1x320xf32, #tpu.memory_space<vmem>>, vector<1x320xf32>
    %4 = vector.broadcast %3 : vector<1x320xf32> to vector<8x320xf32>
    %5 = arith.addf %2, %4 : vector<8x320xf32>
    %c0_5 = arith.constant 0 : index
    %c0_6 = arith.constant 0 : index
    %6 = vector.load %arg4[%c0_5, %c0_6] : memref<64x256xf32, #tpu.memory_space<vmem>>, vector<64x256xf32>
    %7 = vector.extract_strided_slice %5 {offsets = [0, 128], sizes = [8, 64], strides = [1, 1]} : vector<8x320xf32> to vector<8x64xf32>
    %cst_7 = arith.constant 0.000000e+00 : f32
    %8 = vector.broadcast %cst_7 : f32 to vector<8x64xf32>
    %9 = arith.maximumf %7, %8 : vector<8x64xf32>
    %10 = vector.extract_strided_slice %5 {offsets = [0, 192], sizes = [8, 64], strides = [1, 1]} : vector<8x320xf32> to vector<8x64xf32>
    %11 = vector.extract_strided_slice %6 {offsets = [0, 0], sizes = [64, 64], strides = [1, 1]} : vector<64x256xf32> to vector<64x64xf32>
    %cst_8 = arith.constant dense<0.000000e+00> : vector<8x64xf32>
    %12 = tpu.matmul %9, %11, %cst_8 {dimension_numbers = #tpu.dot_dimension_numbers<[1], [0], [0], [1], [0, 0, 1, 1], [], []>} : vector<8x64xf32>, vector<64x64xf32>, vector<8x64xf32> -> vector<8x64xf32>
    %13 = arith.addf %10, %12 : vector<8x64xf32>
    %cst_9 = arith.constant 0.000000e+00 : f32
    %14 = vector.broadcast %cst_9 : f32 to vector<8x64xf32>
    %15 = arith.maximumf %13, %14 : vector<8x64xf32>
    %16 = vector.extract_strided_slice %5 {offsets = [0, 256], sizes = [8, 64], strides = [1, 1]} : vector<8x320xf32> to vector<8x64xf32>
    %17 = vector.extract_strided_slice %6 {offsets = [0, 64], sizes = [64, 64], strides = [1, 1]} : vector<64x256xf32> to vector<64x64xf32>
    %cst_10 = arith.constant dense<0.000000e+00> : vector<8x64xf32>
    %18 = tpu.matmul %15, %17, %cst_10 {dimension_numbers = #tpu.dot_dimension_numbers<[1], [0], [0], [1], [0, 0, 1, 1], [], []>} : vector<8x64xf32>, vector<64x64xf32>, vector<8x64xf32> -> vector<8x64xf32>
    %19 = arith.addf %16, %18 : vector<8x64xf32>
    %cst_11 = arith.constant 0.000000e+00 : f32
    %20 = vector.broadcast %cst_11 : f32 to vector<8x64xf32>
    %21 = arith.maximumf %19, %20 : vector<8x64xf32>
    %22 = vector.extract_strided_slice %5 {offsets = [0, 0], sizes = [8, 128], strides = [1, 1]} : vector<8x320xf32> to vector<8x128xf32>
    %23 = vector.extract_strided_slice %6 {offsets = [0, 128], sizes = [64, 128], strides = [1, 1]} : vector<64x256xf32> to vector<64x128xf32>
    %cst_12 = arith.constant dense<0.000000e+00> : vector<8x128xf32>
    %24 = tpu.matmul %21, %23, %cst_12 {dimension_numbers = #tpu.dot_dimension_numbers<[1], [0], [0], [1], [0, 0, 1, 1], [], []>} : vector<8x64xf32>, vector<64x128xf32>, vector<8x128xf32> -> vector<8x128xf32>
    %25 = arith.addf %22, %24 : vector<8x128xf32>
    %c0_13 = arith.constant 0 : index
    %c0_14 = arith.constant 0 : index
    %26 = vector.load %arg1[%c0_13, %c0_14] : memref<8x128xf32, #tpu.memory_space<vmem>>, vector<8x128xf32>
    %cst_15 = arith.constant 3.000000e-01 : f32
    %27 = vector.broadcast %cst_15 : f32 to vector<8x128xf32>
    %28 = arith.mulf %26, %27 : vector<8x128xf32>
    %29 = arith.addf %25, %28 : vector<8x128xf32>
    %c0_16 = arith.constant 0 : index
    %c0_17 = arith.constant 0 : index
    %30 = vector.load %arg5[%c0_16, %c0_17] : memref<8x128xf32, #tpu.memory_space<vmem>>, vector<8x128xf32>
    tpu.vector_store %arg5[%c0_16, %c0_17], %29 {strides = array<i32>} : memref<8x128xf32, #tpu.memory_space<vmem>>, vector<8x128xf32>,
    return
  }
}

</mosaic_0001>

<llo_original>
// kernel: slpe_forward.1
$region0: #{slpe_forward.1}
  #allocation0 [shape = 'u32[]', space=smem, size = 0x4, offset = 0x4, fixed_abs, tag = 'smem constant byte address 0x4 - core index']
  #allocation1 [shape = 'u32[72,128]{1,0:T(1,128)}', space=vmem, size = 0x9000, scoped, tag = 'internal scratch']
  %s0 = inlined_call_operand.vmem [shape: f32[8,56], index: 0, kind: input, shape index: {}]
  %s1 = inlined_call_operand.vmem [shape: f32[8,128], index: 1, kind: input, shape index: {}]
  %s2 = inlined_call_operand.hbm [shape: f32[56,320], index: 2, kind: input, shape index: {}]
  %s3 = inlined_call_operand.vmem [shape: f32[1,320], index: 3, kind: input, shape index: {}]
  %s4 = inlined_call_operand.hbm [shape: f32[64,256], index: 4, kind: input, shape index: {}]
  %s5 = inlined_call_operand.vmem [shape: f32[8,128], index: 5, kind: output, shape index: {}]
  %s6 = sld [smem:[#allocation0]]
  $region38: #{slpe_forward.1} parent=0
    _
  %s8 = ssub.s32 1, %s6
  %s9 = scalar_select 0, %s8, %s6
  $region1: #{slpe_forward.1} parent=0
    #allocation2 [shape = 'u8[86016]{0}', space=vmem, size = 0x15000, scoped, tag = 'input window, operand 2, single buffered']
    #allocation3 [shape = 's32[1]{0}', space=sflag, size = 0x4, scoped, tag = 'scoped memory for slpe_forward.1']
    #allocation4 [shape = 'u8[65536]{0}', space=vmem, size = 0x10000, scoped, tag = 'input window, operand 4, single buffered']
    #allocation5 [shape = 's32[1]{0}', space=sflag, size = 0x4, scoped, tag = 'scoped memory for slpe_forward.1']
    %10 = vsyncpa [#allocation3], 0
    %11 = vsyncpa [#allocation5], 0
    // Predicated region
    $region2: #{slpe_forward.1} parent=1 // pred_check
      _
    $region3: #{slpe_forward.1} parent=1 // pred_check_branch
      %13 = sbr.rel (0) target = $region5
    $region4: #{slpe_forward.1} parent=1 // pred_region
      _
    $region5: #{slpe_forward.1} parent=1 // pred_fallthru
      _
    // Predicated region
    $region6: #{slpe_forward.1} parent=1 // pred_check
      _
    $region7: #{slpe_forward.1} parent=1 // pred_check_branch
      %15 = sbr.rel (0) target = $region9
    $region8: #{slpe_forward.1} parent=1 // pred_region
      _
    $region9: #{slpe_forward.1} parent=1 // pred_fallthru
      _
    // Predicated region
    $region10: #{slpe_forward.1} parent=1 // pred_check
      _
    $region11: #{slpe_forward.1} parent=1 // pred_check_branch
      %17 = sbr.rel (0) target = $region13
    $region12: #{slpe_forward.1} parent=1 // pred_region
      %19 = vsyncadd [#allocation3], 0
      %s20 = sshll.u32 %s2, 4
      %s21 = int_to_ptr.hbm [resolvable:$true] %s20
      %s22 = sshll.u32 [#allocation2], 4
      %s23 = int_to_ptr.vmem [resolvable:$true] %s22
      %28 = dma.hbm_to_vmem [thread:$0]  %s21, 2688, %s23, [#allocation3], 384, 384, 24
    $region13: #{slpe_forward.1} parent=1 // pred_fallthru
      _
    // Predicated region
    $region14: #{slpe_forward.1} parent=1 // pred_check
      _
    $region15: #{slpe_forward.1} parent=1 // pred_check_branch
      %30 = sbr.rel (0) target = $region17
    $region16: #{slpe_forward.1} parent=1 // pred_region
      _
    $region17: #{slpe_forward.1} parent=1 // pred_fallthru
      _
    // Predicated region
    $region18: #{slpe_forward.1} parent=1 // pred_check
      _
    $region19: #{slpe_forward.1} parent=1 // pred_check_branch
      %32 = sbr.rel (0) target = $region21
    $region20: #{slpe_forward.1} parent=1 // pred_region
      %34 = vsyncadd [#allocation5], 0
      %s35 = sshll.u32 %s4, 4
      %s36 = int_to_ptr.hbm [resolvable:$true] %s35
      %s37 = sshll.u32 [#allocation4], 4
      %s38 = int_to_ptr.vmem [resolvable:$true] %s37
      %43 = dma.hbm_to_vmem [thread:$0]  %s36, 2048, %s38, [#allocation5], 256, 256, 16
    $region21: #{slpe_forward.1} parent=1 // pred_fallthru
      _
    // Predicated region
    $region22: #{slpe_forward.1} parent=1 // pred_check
      _
    $region23: #{slpe_forward.1} parent=1 // pred_check_branch
      %45 = sbr.rel (0) target = $region25
    $region24: #{slpe_forward.1} parent=1 // pred_region
      %47 = dma.done [#allocation3], 2688
    $region25: #{slpe_forward.1} parent=1 // pred_fallthru
      _
    // Predicated region
    $region26: #{slpe_forward.1} parent=1 // pred_check
      _
    $region27: #{slpe_forward.1} parent=1 // pred_check_branch
      %49 = sbr.rel (0) target = $region29
    $region28: #{slpe_forward.1} parent=1 // pred_region
      %51 = dma.done [#allocation5], 2048
    $region29: #{slpe_forward.1} parent=1 // pred_fallthru
      _
    %v52 = vld [vmem:[%s0] sm:$0xff]
    %v53 = vld [vmem:[#allocation2] sm:$0xff]
    %v54 = vld [vmem:[#allocation2 + $0x8] sm:$0xff]
    %v55 = vld [vmem:[#allocation2 + $0x10] sm:$0xff]
    %v56 = vld [vmem:[#allocation2 + $0x18] sm:$0xff]
    %v57 = vld [vmem:[#allocation2 + $0x20] sm:$0xff]
    %v58 = vld [vmem:[#allocation2 + $0x28] sm:$0xff]
    %v59 = vld [vmem:[#allocation2 + $0x30] sm:$0xff]
    %v60 = vld [vmem:[#allocation2 + $0x38] sm:$0xff]
    %v61 = vld [vmem:[#allocation2 + $0x40] sm:$0xff]
    %v62 = vld [vmem:[#allocation2 + $0x48] sm:$0xff]
    %v63 = vld [vmem:[#allocation2 + $0x50] sm:$0xff]
    %v64 = vld [vmem:[#allocation2 + $0x58] sm:$0xff]
    %v65 = vld [vmem:[#allocation2 + $0x60] sm:$0xff]
    %v66 = vld [vmem:[#allocation2 + $0x68] sm:$0xff]
    %v67 = vld [vmem:[#allocation2 + $0x70] sm:$0xff]
    %v68 = vld [vmem:[#allocation2 + $0x78] sm:$0xff]
    %v69 = vld [vmem:[#allocation2 + $0x80] sm:$0xff]
    %v70 = vld [vmem:[#allocation2 + $0x88] sm:$0xff]
    %v71 = vld [vmem:[#allocation2 + $0x90] sm:$0xff]
    %v72 = vld [vmem:[#allocation2 + $0x98] sm:$0xff]
    %v73 = vld [vmem:[#allocation2 + $0xa0] sm:$0xff]
    %v74 = vld [vmem:[%s3] sm:$0x7]
    %v76 = vperm.slane %v74, 0
    %v77 = vperm.slane %v74, 1
    %v78 = vperm.slane %v74, 2
    %vm82 = vcmask 457728
    %v84 = vsel %vm82, %v52, 0
    %86 = vmatpush.msra.mxu0 0.0
    %87 = vmatpush.msra.mxu0 0.0
    %88 = vmatpush.msra.mxu0 0.0
    %89 = vmatpush.msra.mxu0 0.0
    %90 = vmatpush.msra.mxu0 0.0
    %91 = vmatpush.msra.mxu0 0.0
    %92 = vmatpush.msra.mxu0 0.0
    %93 = vmatpush.msra.mxu0 0.0
    %94 = vmatpush.msra.mxu0 0.0
    %95 = vmatpush.msra.mxu0 %v71
    %96 = vmatpush.msra.mxu0 %v68
    %97 = vmatpush.msra.mxu0 %v65
    %98 = vmatpush.msra.mxu0 %v62
    %99 = vmatpush.msra.mxu0 %v59
    %100 = vmatpush.msra.mxu0 %v56
    %101 = vmatpush.msra.mxu0 %v53
    %102 = vmatmul.f32.gmra.mxu0 %v84
    %v103 = vpop.f32.mrf.mxu0
    %v104 = vadd.f32 %v76, %v103
    %105 = vdwg.mxu0
    %106 = vmatpush.msra.mxu0 0.0
    %107 = vmatpush.msra.mxu0 0.0
    %108 = vmatpush.msra.mxu0 0.0
    %109 = vmatpush.msra.mxu0 0.0
    %110 = vmatpush.msra.mxu0 0.0
    %111 = vmatpush.msra.mxu0 0.0
    %112 = vmatpush.msra.mxu0 0.0
    %113 = vmatpush.msra.mxu0 0.0
    %114 = vmatpush.msra.mxu0 0.0
    %115 = vmatpush.msra.mxu0 %v72
    %116 = vmatpush.msra.mxu0 %v69
    %117 = vmatpush.msra.mxu0 %v66
    %118 = vmatpush.msra.mxu0 %v63
    %119 = vmatpush.msra.mxu0 %v60
    %120 = vmatpush.msra.mxu0 %v57
    %121 = vmatpush.msra.mxu0 %v54
    %122 = vmatmul.f32.gmra.mxu0 %v84
    %v123 = vpop.f32.mrf.mxu0
    %v124 = vadd.f32 %v77, %v123
    %125 = vdwg.mxu0
    %126 = vmatpush.msra.mxu0 0.0
    %127 = vmatpush.msra.mxu0 0.0
    %128 = vmatpush.msra.mxu0 0.0
    %129 = vmatpush.msra.mxu0 0.0
    %130 = vmatpush.msra.mxu0 0.0
    %131 = vmatpush.msra.mxu0 0.0
    %132 = vmatpush.msra.mxu0 0.0
    %133 = vmatpush.msra.mxu0 0.0
    %134 = vmatpush.msra.mxu0 0.0
    %135 = vmatpush.msra.mxu0 %v73
    %136 = vmatpush.msra.mxu0 %v70
    %137 = vmatpush.msra.mxu0 %v67
    %138 = vmatpush.msra.mxu0 %v64
    %139 = vmatpush.msra.mxu0 %v61
    %140 = vmatpush.msra.mxu0 %v58
    %141 = vmatpush.msra.mxu0 %v55
    %142 = vmatmul.f32.gmra.mxu0 %v84
    %v143 = vpop.f32.mrf.mxu0
    %v144 = vadd.f32 %v78, %v143
    %145 = vdwg.mxu0
    %v146 = vld [vmem:[#allocation4] sm:$0xff]
    %v147 = vld [vmem:[#allocation4 + $0x8] sm:$0xff]
    %v148 = vld [vmem:[#allocation4 + $0x10] sm:$0xff]
    %v149 = vld [vmem:[#allocation4 + $0x18] sm:$0xff]
    %v150 = vld [vmem:[#allocation4 + $0x20] sm:$0xff]
    %v151 = vld [vmem:[#allocation4 + $0x28] sm:$0xff]
    %v152 = vld [vmem:[#allocation4 + $0x30] sm:$0xff]
    %v153 = vld [vmem:[#allocation4 + $0x38] sm:$0xff]
    %v154 = vld [vmem:[#allocation4 + $0x40] sm:$0xff]
    %v155 = vld [vmem:[#allocation4 + $0x48] sm:$0xff]
    %v156 = vld [vmem:[#allocation4 + $0x50] sm:$0xff]
    %v157 = vld [vmem:[#allocation4 + $0x58] sm:$0xff]
    %v158 = vld [vmem:[#allocation4 + $0x60] sm:$0xff]
    %v159 = vld [vmem:[#allocation4 + $0x68] sm:$0xff]
    %v160 = vld [vmem:[#allocation4 + $0x70] sm:$0xff]
    %v161 = vld [vmem:[#allocation4 + $0x78] sm:$0xff]
    %v162 = vmax.f32 %v124, 0.0
    %vm163 = vcmask 523264
    %v165 = vsel %vm163, %v162, 0
    %167 = vmatpush.msra.mxu0 0.0
    %168 = vmatpush.msra.mxu0 0.0
    %169 = vmatpush.msra.mxu0 0.0
    %170 = vmatpush.msra.mxu0 0.0
    %171 = vmatpush.msra.mxu0 0.0
    %172 = vmatpush.msra.mxu0 0.0
    %173 = vmatpush.msra.mxu0 0.0
    %174 = vmatpush.msra.mxu0 0.0
    %175 = vmatpush.msra.mxu0 %v160
    %176 = vmatpush.msra.mxu0 %v158
    %177 = vmatpush.msra.mxu0 %v156
    %178 = vmatpush.msra.mxu0 %v154
    %179 = vmatpush.msra.mxu0 %v152
    %180 = vmatpush.msra.mxu0 %v150
    %181 = vmatpush.msra.mxu0 %v148
    %182 = vmatpush.msra.mxu0 %v146
    %183 = vmatmul.f32.gmra.mxu0 %v165
    %v184 = vpop.f32.mrf.mxu0
    %v185 = vadd.f32 0.0, %v184
    %186 = vdwg.mxu0
    %188 = vrot.lane.b32.xlu0 %v185, 64
    %v189 = vpop.permute.xlu0 %188
    %v191 = vadd.f32 %v124, %v189
    %v192 = vmax.f32 %v191, 0.0
    %194 = vrot.lane.b32.xlu0 %v192, 64
    %v195 = vpop.permute.xlu0 %194
    %204 = vrot.lane.b32.xlu0 %v146, 64
    %v205 = vpop.permute.xlu0 %204
    %206 = vrot.lane.b32.xlu0 %v148, 64
    %v207 = vpop.permute.xlu0 %206
    %208 = vrot.lane.b32.xlu0 %v150, 64
    %v209 = vpop.permute.xlu0 %208
    %210 = vrot.lane.b32.xlu0 %v152, 64
    %v211 = vpop.permute.xlu0 %210
    %212 = vrot.lane.b32.xlu0 %v154, 64
    %v213 = vpop.permute.xlu0 %212
    %214 = vrot.lane.b32.xlu0 %v156, 64
    %v215 = vpop.permute.xlu0 %214
    %216 = vrot.lane.b32.xlu0 %v158, 64
    %v217 = vpop.permute.xlu0 %216
    %218 = vrot.lane.b32.xlu0 %v160, 64
    %v219 = vpop.permute.xlu0 %218
    %v228 = vsel %vm163, %v195, 0
    %230 = vmatpush.msra.mxu0 0.0
    %231 = vmatpush.msra.mxu0 0.0
    %232 = vmatpush.msra.mxu0 0.0
    %233 = vmatpush.msra.mxu0 0.0
    %234 = vmatpush.msra.mxu0 0.0
    %235 = vmatpush.msra.mxu0 0.0
    %236 = vmatpush.msra.mxu0 0.0
    %237 = vmatpush.msra.mxu0 0.0
    %238 = vmatpush.msra.mxu0 %v219
    %239 = vmatpush.msra.mxu0 %v217
    %240 = vmatpush.msra.mxu0 %v215
    %241 = vmatpush.msra.mxu0 %v213
    %242 = vmatpush.msra.mxu0 %v211
    %243 = vmatpush.msra.mxu0 %v209
    %244 = vmatpush.msra.mxu0 %v207
    %245 = vmatpush.msra.mxu0 %v205
    %246 = vmatmul.f32.gmra.mxu0 %v228
    %v247 = vpop.f32.mrf.mxu0
    %v248 = vadd.f32 0.0, %v247
    %249 = vdwg.mxu0
    %v250 = vadd.f32 %v144, %v248
    %v251 = vmax.f32 %v250, 0.0
    %v253 = vsel %vm163, %v251, 0
    %255 = vmatpush.msra.mxu0 0.0
    %256 = vmatpush.msra.mxu0 0.0
    %257 = vmatpush.msra.mxu0 0.0
    %258 = vmatpush.msra.mxu0 0.0
    %259 = vmatpush.msra.mxu0 0.0
    %260 = vmatpush.msra.mxu0 0.0
    %261 = vmatpush.msra.mxu0 0.0
    %262 = vmatpush.msra.mxu0 0.0
    %263 = vmatpush.msra.mxu0 %v161
    %264 = vmatpush.msra.mxu0 %v159
    %265 = vmatpush.msra.mxu0 %v157
    %266 = vmatpush.msra.mxu0 %v155
    %267 = vmatpush.msra.mxu0 %v153
    %268 = vmatpush.msra.mxu0 %v151
    %269 = vmatpush.msra.mxu0 %v149
    %270 = vmatpush.msra.mxu0 %v147
    %271 = vmatmul.f32.gmra.mxu0 %v253
    %v272 = vpop.f32.mrf.mxu0
    %v273 = vadd.f32 0.0, %v272
    %274 = vdwg.mxu0
    %v275 = vadd.f32 %v104, %v273
    %v276 = vld [vmem:[%s1] sm:$0xff]
    %v277 = vmul.f32 %v276, 0.3
    %v278 = vadd.f32 %v275, %v277
    %279 = vst [vmem:[%s5] sm:$0xff] %v278
    // Predicated region
    $region30: #{slpe_forward.1} parent=1 // pred_check
      _
    $region31: #{slpe_forward.1} parent=1 // pred_check_branch
      %281 = sbr.rel (0) target = $region33
    $region32: #{slpe_forward.1} parent=1 // pred_region
      _
    $region33: #{slpe_forward.1} parent=1 // pred_fallthru
      _
    // Predicated region
    $region34: #{slpe_forward.1} parent=1 // pred_check
      _
    $region35: #{slpe_forward.1} parent=1 // pred_check_branch
      %283 = sbr.rel (0) target = $region37
    $region36: #{slpe_forward.1} parent=1 // pred_region
      _
    $region37: #{slpe_forward.1} parent=1 // pred_fallthru
      _
    %284 = vsyncpa [#allocation3], 1
    %285 = vsyncpa [#allocation5], 1

</llo_original>
